<compile_context>
chip_gen: v7x
topology: tpu7x:2x2x1
jax: 0.10.0
libtpu: 0.0.40
codegen_flags: <defaults>
</compile_context>

<pallas_src>
import functools

import jax
import jax.numpy as jnp
import numpy as np
from jax.experimental import pallas as pl
from jax.experimental.pallas import tpu as pltpu


# ---------------------------------------------------------------------------
# Kernel bodies
# ---------------------------------------------------------------------------

def _unpack_consts(consts_ref, hidden, C):
    """Packed column vector: [b1 (hidden) | b2 (C) | ls1 (C) | ls2 (C)], shape (hidden+3C, 1)."""
    b1 = consts_ref[0:hidden]                          # (hidden, 1)
    b2 = consts_ref[hidden:hidden + C]                 # (C, 1)
    ls1 = consts_ref[hidden + C:hidden + 2 * C]        # (C, 1)
    ls2 = consts_ref[hidden + 2 * C:hidden + 3 * C]    # (C, 1)
    return b1, b2, ls1, ls2


def _mlp_bf16(x1_f32, w1t_ref, w2t_ref, b1, b2):
    """Two 1x1 convs, channels on sublanes / pixels on lanes; bf16 inputs, f32 accumulation."""
    h = jnp.dot(w1t_ref[...], x1_f32.astype(jnp.bfloat16),
                preferred_element_type=jnp.float32) + b1           # (hidden, HW) f32
    # bf16 hidden activation: halves vreg pressure of the largest intermediate;
    # error is scaled by layer_scale_2 ~ 1e-5 downstream.
    h = jnp.maximum(h.astype(jnp.bfloat16), 0.0)                    # ReLU, bf16
    return jnp.dot(w2t_ref[...], h, preferred_element_type=jnp.float32) + b2  # (C, HW) f32


def _meta4d_kernel_per_image(x_ref, pt_ref, w1t_ref, w2t_ref, consts_ref, o_ref):
    """grid=(B,) 'parallel' path (dual-TensorCore chips, e.g. v7x): one image per step."""
    hidden = w1t_ref.shape[0]
    C = w2t_ref.shape[0]
    b1, b2, ls1, ls2 = _unpack_consts(consts_ref, hidden, C)

    x = x_ref[0]                                                    # (C, HW) f32
    # token mixer: 3x3 avg pool (count_include_pad=False) as one bf16 MXU matmul
    pool = jnp.dot(x.astype(jnp.bfloat16), pt_ref[...],
                   preferred_element_type=jnp.float32)              # (C, HW) f32
    x1 = x + (pool - x) * ls1                                       # residual 1
    y = _mlp_bf16(x1, w1t_ref, w2t_ref, b1, b2)
    o_ref[0] = x1 + y * ls2                                         # residual 2


def _meta4d_kernel_batched(x_ref, pt_ref, w1t_ref, w2t_ref, consts_ref, o_ref):
    """Single-grid-step path (single-TensorCore chips, v5e/v6e): whole batch at once."""
    B, C, HW = x_ref.shape
    hidden = w1t_ref.shape[0]
    b1, b2, ls1, ls2 = _unpack_consts(consts_ref, hidden, C)

    x = x_ref[...]                                                  # (B, C, HW) f32
    # Pool the whole batch with one (B*C, HW) @ (HW, HW) matmul: (B,C)->(B*C) is a
    # free major-dim merge and doubles MXU M-occupancy vs. per-image.
    pool = jnp.dot(x.reshape(B * C, HW).astype(jnp.bfloat16), pt_ref[...],
                   preferred_element_type=jnp.float32).reshape(B, C, HW)
    x1 = x + (pool - x) * ls1                                       # (C,1) broadcasts over (B,C,HW)
    for b in range(B):                                              # B is small & static
        y = _mlp_bf16(x1[b], w1t_ref, w2t_ref, b1, b2)
        o_ref[b] = x1[b] + y * ls2


# ---------------------------------------------------------------------------
# Host-side constant prep
# ---------------------------------------------------------------------------

@functools.lru_cache(maxsize=None)
def _pool3x3_operator_np(H, W):
    """P^T (HW, HW) float32 such that x_flat @ P^T reproduces
    AvgPool2d(3, stride=1, padding=1, count_include_pad=False) on an (H, W)
    grid flattened as p = h*W + w.  Memoized: built once per (H, W)."""
    # TODO(synk): for large stages (e.g. 56x56, dense P^T ~ 37.5 MiB f32, exceeds
    # v7x's 64 MiB VMEM when double-buffered) switch to separable (H,H)/(W,W)
    # row/column operators (counts factor as count_h * count_w).
    HW = H * W
    P = np.zeros((HW, HW), np.float32)
    for h in range(H):
        h0, h1 = max(0, h - 1), min(H, h + 2)
        for w in range(W):
            w0, w1 = max(0, w - 1), min(W, w + 2)
            inv = 1.0 / ((h1 - h0) * (w1 - w0))
            for hh in range(h0, h1):
                for ww in range(w0, w1):
                    P[h * W + w, hh * W + ww] = inv
    return P.T


def _use_parallel_batch_grid():
    """True on chips with 2 TensorCores per chip (v7x): shard the batch across TCs."""
    try:
        kind = jax.devices()[0].device_kind.lower()
    except Exception:
        return False
    return "v7" in kind


# ---------------------------------------------------------------------------
# Forward wrapper
# ---------------------------------------------------------------------------

def meta4d_forward(x_nchw, w1, b1, w2, b2, ls1, ls2):
    """x_nchw: (B, C, H, W) float32 -> (B, C, H, W) float32.

    w1: (C, hidden), b1: (hidden,)   -- Mlp.fc1 (1x1 conv)
    w2: (hidden, C), b2: (C,)        -- Mlp.fc2 (1x1 conv)
    ls1, ls2: (C,)                   -- layer_scale_1 / layer_scale_2
    """
    B, C, H, W = x_nchw.shape
    hidden = w1.shape[1]
    HW = H * W

    x_flat = x_nchw.astype(jnp.float32).reshape(B, C, HW)           # minor-dim merge: free
    pool_op = jnp.asarray(_pool3x3_operator_np(H, W)).astype(jnp.bfloat16)  # (HW, HW) bf16
    w1t = jnp.asarray(w1, jnp.float32).T.astype(jnp.bfloat16)       # (hidden, C) bf16
    w2t = jnp.asarray(w2, jnp.float32).T.astype(jnp.bfloat16)       # (C, hidden) bf16
    consts = jnp.concatenate([
        jnp.asarray(b1, jnp.float32).reshape(hidden, 1),
        jnp.asarray(b2, jnp.float32).reshape(C, 1),
        jnp.asarray(ls1, jnp.float32).reshape(C, 1),
        jnp.asarray(ls2, jnp.float32).reshape(C, 1),
    ], axis=0)                                                       # (hidden + 3C, 1) f32

    flops = 2 * B * C * HW * (HW + 2 * hidden)
    bytes_accessed = (2 * x_flat.size * 4                  # x in + out (f32)
                      + pool_op.size * 2                    # pooling operator (bf16)
                      + (w1t.size + w2t.size) * 2           # weights (bf16)
                      + consts.size * 4)                    # packed biases / scales
    cost = pl.CostEstimate(flops=flops, transcendentals=0,
                           bytes_accessed=bytes_accessed)

    zero2 = lambda *_: (0, 0)   # constant operands: DMA'd once, resident across steps

    if _use_parallel_batch_grid():
        # Dual-TC chip: one image per grid step, sharded across TensorCores.
        kernel = _meta4d_kernel_per_image
        grid = (B,)
        x_spec = pl.BlockSpec((1, C, HW), lambda b: (b, 0, 0))
        out_spec = pl.BlockSpec((1, C, HW), lambda b: (b, 0, 0))
        semantics = ("parallel",)
    else:
        # Single-TC chip (v5e/v6e): whole batch in one grid step.
        kernel = _meta4d_kernel_batched
        grid = (1,)
        x_spec = pl.BlockSpec((B, C, HW), lambda i: (0, 0, 0))
        out_spec = pl.BlockSpec((B, C, HW), lambda i: (0, 0, 0))
        semantics = ("arbitrary",)

    out_flat = pl.pallas_call(
        kernel,
        out_shape=jax.ShapeDtypeStruct((B, C, HW), jnp.float32),
        grid_spec=pltpu.PrefetchScalarGridSpec(
            num_scalar_prefetch=0,
            grid=grid,
            in_specs=[
                x_spec,                                          # x (per image / per batch)
                pl.BlockSpec((HW, HW), zero2),                   # pooling operator (bf16)
                pl.BlockSpec((hidden, C), zero2),                # fc1 weight^T (bf16)
                pl.BlockSpec((C, hidden), zero2),                # fc2 weight^T (bf16)
                pl.BlockSpec((hidden + 3 * C, 1), zero2),        # packed b1|b2|ls1|ls2
            ],
            out_specs=out_spec,
        ),
        compiler_params=pltpu.CompilerParams(dimension_semantics=semantics),
        cost_estimate=cost,
    )(x_flat, pool_op, w1t, w2t, consts)

    return out_flat.reshape(B, C, H, W)


# ---------------------------------------------------------------------------
# Pure-numpy reference of the PyTorch forward (NCHW)
# ---------------------------------------------------------------------------

def _ref_forward_np(x, w1, b1, w2, b2, ls1, ls2):
    B, C, H, W = x.shape
    pool = np.zeros_like(x)
    for hh in range(H):
        for ww in range(W):
            h0, h1 = max(0, hh - 1), min(H, hh + 2)
            w0, w1e = max(0, ww - 1), min(W, ww + 2)
            pool[:, :, hh, ww] = x[:, :, h0:h1, w0:w1e].mean(axis=(2, 3))
    x1 = x + (pool - x) * ls1[None, :, None, None]
    xf = x1.transpose(0, 2, 3, 1).reshape(-1, C)
    hmid = np.maximum(xf @ w1 + b1, 0.0)
    y = hmid @ w2 + b2
    out = xf + y * ls2
    return out.reshape(B, H, W, C).transpose(0, 3, 1, 2)


if __name__ == "__main__":
    B, C, H, W = 2, 32, 16, 16
    mlp_ratio = 4.0
    hidden = int(C * mlp_ratio)            # 128
    layer_scale_init_value = 1e-5

    key = jax.random.PRNGKey(0)
    ks = jax.random.split(key, 5)
    x = jax.random.normal(ks[0], (B, C, H, W), jnp.float32)
    w1 = jax.random.normal(ks[1], (C, hidden), jnp.float32) * 0.1   # fc1 (1x1 conv)
    b1 = jax.random.normal(ks[2], (hidden,), jnp.float32) * 0.1
    w2 = jax.random.normal(ks[3], (hidden, C), jnp.float32) * 0.1   # fc2 (1x1 conv)
    b2 = jax.random.normal(ks[4], (C,), jnp.float32) * 0.1
    ls1 = jnp.full((C,), layer_scale_init_value, jnp.float32)
    ls2 = jnp.full((C,), layer_scale_init_value, jnp.float32)

    out = jax.block_until_ready(meta4d_forward(x, w1, b1, w2, b2, ls1, ls2))

    ref = _ref_forward_np(np.asarray(x), np.asarray(w1), np.asarray(b1),
                          np.asarray(w2), np.asarray(b2),
                          np.asarray(ls1), np.asarray(ls2))
    np.testing.assert_allclose(np.asarray(out), ref, atol=1e-4, rtol=1e-4)
    print("KERNEL_OK")
</pallas_src>

<mosaic_0001>
module attributes {stable_mosaic.version = 11 : i64} {
  func.func @_meta4d_kernel_batched(%arg0: i32, %arg1: memref<2x32x256xf32, #tpu.memory_space<vmem>>, %arg2: memref<256x256xbf16, #tpu.memory_space<vmem>>, %arg3: memref<128x32xbf16, #tpu.memory_space<vmem>>, %arg4: memref<32x128xbf16, #tpu.memory_space<vmem>>, %arg5: memref<224x1xf32, #tpu.memory_space<vmem>>, %arg6: memref<2x32x256xf32, #tpu.memory_space<vmem>>) attributes {dimension_semantics = [#tpu.dimension_semantics<arbitrary>], iteration_bounds = array<i64: 1>, scalar_prefetch = 0 : i64, scratch_operands = 0 : i64, tpu.core_type = #tpu.core_type<tc>, window_params = [{pipeline_mode = #tpu.pipeline_mode<synchronous>, transform_indices = @transform_0, window_bounds = array<i64: 2, 32, 256>}, {pipeline_mode = #tpu.pipeline_mode<synchronous>, transform_indices = @transform_1, window_bounds = array<i64: 256, 256>}, {pipeline_mode = #tpu.pipeline_mode<synchronous>, transform_indices = @transform_2, window_bounds = array<i64: 128, 32>}, {pipeline_mode = #tpu.pipeline_mode<synchronous>, transform_indices = @transform_3, window_bounds = array<i64: 32, 128>}, {pipeline_mode = #tpu.pipeline_mode<synchronous>, transform_indices = @transform_4, window_bounds = array<i64: 224, 1>}, {pipeline_mode = #tpu.pipeline_mode<synchronous>, transform_indices = @transform_5, window_bounds = array<i64: 2, 32, 256>}]} {
    %c0 = arith.constant 0 : index
    %c0_0 = arith.constant 0 : index
    %0 = vector.load %arg5[%c0, %c0_0] : memref<224x1xf32, #tpu.memory_space<vmem>>, vector<128x1xf32>
    %c128 = arith.constant 128 : index
    %c0_1 = arith.constant 0 : index
    %1 = vector.load %arg5[%c128, %c0_1] : memref<224x1xf32, #tpu.memory_space<vmem>>, vector<32x1xf32>
    %c160 = arith.constant 160 : index
    %c0_2 = arith.constant 0 : index
    %2 = vector.load %arg5[%c160, %c0_2] : memref<224x1xf32, #tpu.memory_space<vmem>>, vector<32x1xf32>
    %c192 = arith.constant 192 : index
    %c0_3 = arith.constant 0 : index
    %3 = vector.load %arg5[%c192, %c0_3] : memref<224x1xf32, #tpu.memory_space<vmem>>, vector<32x1xf32>
    %c0_4 = arith.constant 0 : index
    %c0_5 = arith.constant 0 : index
    %c0_6 = arith.constant 0 : index
    %4 = vector.load %arg1[%c0_4, %c0_5, %c0_6] : memref<2x32x256xf32, #tpu.memory_space<vmem>>, vector<2x32x256xf32>
    %5 = vector.shape_cast %4 : vector<2x32x256xf32> to vector<64x256xf32>
    %6 = arith.truncf %5 : vector<64x256xf32> to vector<64x256xbf16>
    %c0_7 = arith.constant 0 : index
    %c0_8 = arith.constant 0 : index
    %7 = vector.load %arg2[%c0_7, %c0_8] : memref<256x256xbf16, #tpu.memory_space<vmem>>, vector<256x256xbf16>
    %cst = arith.constant dense<0.000000e+00> : vector<64x256xf32>
    %8 = tpu.matmul %6, %7, %cst {dimension_numbers = #tpu.dot_dimension_numbers<[1], [0], [0], [1], [0, 0, 1, 1], [], []>} : vector<64x256xbf16>, vector<256x256xbf16>, vector<64x256xf32> -> vector<64x256xf32>
    %9 = vector.shape_cast %8 : vector<64x256xf32> to vector<2x32x256xf32>
    %10 = arith.subf %9, %4 : vector<2x32x256xf32>
    %11 = vector.shape_cast %2 : vector<32x1xf32> to vector<1x32x1xf32>
    %12 = vector.broadcast %11 : vector<1x32x1xf32> to vector<2x32x256xf32>
    %13 = arith.mulf %10, %12 : vector<2x32x256xf32>
    %14 = arith.addf %4, %13 : vector<2x32x256xf32>
    %15 = vector.extract_strided_slice %14 {offsets = [0, 0, 0], sizes = [1, 32, 256], strides = [1, 1, 1]} : vector<2x32x256xf32> to vector<1x32x256xf32>
    %16 = vector.shape_cast %15 : vector<1x32x256xf32> to vector<32x256xf32>
    %c0_9 = arith.constant 0 : index
    %c0_10 = arith.constant 0 : index
    %17 = vector.load %arg3[%c0_9, %c0_10] : memref<128x32xbf16, #tpu.memory_space<vmem>>, vector<128x32xbf16>
    %18 = arith.truncf %16 : vector<32x256xf32> to vector<32x256xbf16>
    %cst_11 = arith.constant dense<0.000000e+00> : vector<128x256xf32>
    %19 = tpu.matmul %17, %18, %cst_11 {dimension_numbers = #tpu.dot_dimension_numbers<[1], [0], [0], [1], [0, 0, 1, 1], [], []>} : vector<128x32xbf16>, vector<32x256xbf16>, vector<128x256xf32> -> vector<128x256xf32>
    %20 = vector.broadcast %0 : vector<128x1xf32> to vector<128x256xf32>
    %21 = arith.addf %19, %20 : vector<128x256xf32>
    %22 = arith.truncf %21 : vector<128x256xf32> to vector<128x256xbf16>
    %cst_12 = arith.constant 0.000000e+00 : bf16
    %23 = vector.broadcast %cst_12 : bf16 to vector<128x256xbf16>
    %24 = arith.maximumf %22, %23 : vector<128x256xbf16>
    %c0_13 = arith.constant 0 : index
    %c0_14 = arith.constant 0 : index
    %25 = vector.load %arg4[%c0_13, %c0_14] : memref<32x128xbf16, #tpu.memory_space<vmem>>, vector<32x128xbf16>
    %cst_15 = arith.constant dense<0.000000e+00> : vector<32x256xf32>
    %26 = tpu.matmul %25, %24, %cst_15 {dimension_numbers = #tpu.dot_dimension_numbers<[1], [0], [0], [1], [0, 0, 1, 1], [], []>} : vector<32x128xbf16>, vector<128x256xbf16>, vector<32x256xf32> -> vector<32x256xf32>
    %27 = vector.broadcast %1 : vector<32x1xf32> to vector<32x256xf32>
    %28 = arith.addf %26, %27 : vector<32x256xf32>
    %29 = vector.extract_strided_slice %14 {offsets = [0, 0, 0], sizes = [1, 32, 256], strides = [1, 1, 1]} : vector<2x32x256xf32> to vector<1x32x256xf32>
    %30 = vector.shape_cast %29 : vector<1x32x256xf32> to vector<32x256xf32>
    %31 = vector.broadcast %3 : vector<32x1xf32> to vector<32x256xf32>
    %32 = arith.mulf %28, %31 : vector<32x256xf32>
    %33 = arith.addf %30, %32 : vector<32x256xf32>
    %c0_16 = arith.constant 0 : index
    %c0_17 = arith.constant 0 : index
    %c0_18 = arith.constant 0 : index
    %34 = vector.load %arg6[%c0_16, %c0_17, %c0_18] : memref<2x32x256xf32, #tpu.memory_space<vmem>>, vector<1x32x256xf32>
    %35 = vector.shape_cast %34 : vector<1x32x256xf32> to vector<32x256xf32>
    %36 = vector.shape_cast %33 : vector<32x256xf32> to vector<1x32x256xf32>
    tpu.vector_store %arg6[%c0_16, %c0_17, %c0_18], %36 {strides = array<i32>} : memref<2x32x256xf32, #tpu.memory_space<vmem>>, vector<1x32x256xf32>,
    %37 = vector.extract_strided_slice %14 {offsets = [1, 0, 0], sizes = [1, 32, 256], strides = [1, 1, 1]} : vector<2x32x256xf32> to vector<1x32x256xf32>
    %38 = vector.shape_cast %37 : vector<1x32x256xf32> to vector<32x256xf32>
    %c0_19 = arith.constant 0 : index
    %c0_20 = arith.constant 0 : index
    %39 = vector.load %arg3[%c0_19, %c0_20] : memref<128x32xbf16, #tpu.memory_space<vmem>>, vector<128x32xbf16>
    %40 = arith.truncf %38 : vector<32x256xf32> to vector<32x256xbf16>
    %cst_21 = arith.constant dense<0.000000e+00> : vector<128x256xf32>
    %41 = tpu.matmul %39, %40, %cst_21 {dimension_numbers = #tpu.dot_dimension_numbers<[1], [0], [0], [1], [0, 0, 1, 1], [], []>} : vector<128x32xbf16>, vector<32x256xbf16>, vector<128x256xf32> -> vector<128x256xf32>
    %42 = vector.broadcast %0 : vector<128x1xf32> to vector<128x256xf32>
    %43 = arith.addf %41, %42 : vector<128x256xf32>
    %44 = arith.truncf %43 : vector<128x256xf32> to vector<128x256xbf16>
    %cst_22 = arith.constant 0.000000e+00 : bf16
    %45 = vector.broadcast %cst_22 : bf16 to vector<128x256xbf16>
    %46 = arith.maximumf %44, %45 : vector<128x256xbf16>
    %c0_23 = arith.constant 0 : index
    %c0_24 = arith.constant 0 : index
    %47 = vector.load %arg4[%c0_23, %c0_24] : memref<32x128xbf16, #tpu.memory_space<vmem>>, vector<32x128xbf16>
    %cst_25 = arith.constant dense<0.000000e+00> : vector<32x256xf32>
    %48 = tpu.matmul %47, %46, %cst_25 {dimension_numbers = #tpu.dot_dimension_numbers<[1], [0], [0], [1], [0, 0, 1, 1], [], []>} : vector<32x128xbf16>, vector<128x256xbf16>, vector<32x256xf32> -> vector<32x256xf32>
    %49 = vector.broadcast %1 : vector<32x1xf32> to vector<32x256xf32>
    %50 = arith.addf %48, %49 : vector<32x256xf32>
    %51 = vector.extract_strided_slice %14 {offsets = [1, 0, 0], sizes = [1, 32, 256], strides = [1, 1, 1]} : vector<2x32x256xf32> to vector<1x32x256xf32>
    %52 = vector.shape_cast %51 : vector<1x32x256xf32> to vector<32x256xf32>
    %53 = vector.broadcast %3 : vector<32x1xf32> to vector<32x256xf32>
    %54 = arith.mulf %50, %53 : vector<32x256xf32>
    %55 = arith.addf %52, %54 : vector<32x256xf32>
    %c1 = arith.constant 1 : index
    %c0_26 = arith.constant 0 : index
    %c0_27 = arith.constant 0 : index
    %56 = vector.load %arg6[%c1, %c0_26, %c0_27] : memref<2x32x256xf32, #tpu.memory_space<vmem>>, vector<1x32x256xf32>
    %57 = vector.shape_cast %56 : vector<1x32x256xf32> to vector<32x256xf32>
    %58 = vector.shape_cast %55 : vector<32x256xf32> to vector<1x32x256xf32>
    tpu.vector_store %arg6[%c1, %c0_26, %c0_27], %58 {strides = array<i32>} : memref<2x32x256xf32, #tpu.memory_space<vmem>>, vector<1x32x256xf32>,
    return
  }
  func.func @transform_0(%arg0: i32) -> (i32, i32, i32) {
    %c0_i32 = arith.constant 0 : i32
    %c0_i32_0 = arith.constant 0 : i32
    %c0_i32_1 = arith.constant 0 : i32
    %c0_i32_2 = arith.constant 0 : i32
    return %c0_i32, %c0_i32_0, %c0_i32_1 : i32, i32, i32
  }
  func.func @transform_1(%arg0: i32) -> (i32, i32) {
    %c0_i32 = arith.constant 0 : i32
    %c0_i32_0 = arith.constant 0 : i32
    %c0_i32_1 = arith.constant 0 : i32
    return %c0_i32, %c0_i32_0 : i32, i32
  }
  func.func @transform_2(%arg0: i32) -> (i32, i32) {
    %c0_i32 = arith.constant 0 : i32
    %c0_i32_0 = arith.constant 0 : i32
    %c0_i32_1 = arith.constant 0 : i32
    return %c0_i32, %c0_i32_0 : i32, i32
  }
  func.func @transform_3(%arg0: i32) -> (i32, i32) {
    %c0_i32 = arith.constant 0 : i32
    %c0_i32_0 = arith.constant 0 : i32
    %c0_i32_1 = arith.constant 0 : i32
    return %c0_i32, %c0_i32_0 : i32, i32
  }
  func.func @transform_4(%arg0: i32) -> (i32, i32) {
    %c0_i32 = arith.constant 0 : i32
    %c0_i32_0 = arith.constant 0 : i32
    %c0_i32_1 = arith.constant 0 : i32
    return %c0_i32, %c0_i32_0 : i32, i32
  }
  func.func @transform_5(%arg0: i32) -> (i32, i32, i32) {
    %c0_i32 = arith.constant 0 : i32
    %c0_i32_0 = arith.constant 0 : i32
    %c0_i32_1 = arith.constant 0 : i32
    %c0_i32_2 = arith.constant 0 : i32
    return %c0_i32, %c0_i32_0, %c0_i32_1 : i32, i32, i32
  }
}

</mosaic_0001>

<llo_original>
// kernel: tpu_custom_call.1
$region0: #{tpu_custom_call.1}
  #allocation0 [shape = 'u32[]', space=smem, size = 0x4, offset = 0x4, fixed_abs, tag = 'smem constant byte address 0x4 - core index']
  #allocation1 [shape = 'u32[144,128]{1,0:T(1,128)}', space=vmem, size = 0x12000, scoped, tag = 'internal scratch']
  %s0 = inlined_call_operand.hbm [shape: f32[2,32,256], index: 0, kind: input, shape index: {}]
  %s1 = inlined_call_operand.vmem [shape: bf16[256,256], index: 1, kind: input, shape index: {}]
  %s2 = inlined_call_operand.vmem [shape: bf16[128,32], index: 2, kind: input, shape index: {}]
  %s3 = inlined_call_operand.vmem [shape: bf16[32,128], index: 3, kind: input, shape index: {}]
  %s4 = inlined_call_operand.vmem [shape: f32[224,1], index: 4, kind: input, shape index: {}]
  %s5 = inlined_call_operand.hbm [shape: f32[2,32,256], index: 5, kind: output, shape index: {}]
  %s6 = sld [smem:[#allocation0]]
  $region34: #{tpu_custom_call.1} parent=0
    _
  %s8 = ssub.s32 1, %s6
  %s9 = scalar_select 0, %s8, %s6
  $region1: #{tpu_custom_call.1} parent=0
    #allocation2 [shape = 'u8[65536]{0}', space=vmem, size = 0x10000, scoped, tag = 'input window, operand 0, single buffered']
    #allocation3 [shape = 's32[1]{0}', space=sflag, size = 0x4, scoped, tag = 'scoped memory for tpu_custom_call.1']
    #allocation4 [shape = 's32[1]{0}', space=sflag, size = 0x4, scoped, tag = 'scoped memory for tpu_custom_call.1']
    #allocation5 [shape = 'u8[65536]{0}', space=vmem, size = 0x10000, scoped, tag = 'output window, operand 0, single buffered']
    %10 = vsyncpa [#allocation3], 0
    %11 = vsyncpa [#allocation4], 0
    // Predicated region
    $region2: #{tpu_custom_call.1} parent=1 // pred_check
      _
    $region3: #{tpu_custom_call.1} parent=1 // pred_check_branch
      %13 = sbr.rel (0) target = $region5
    $region4: #{tpu_custom_call.1} parent=1 // pred_region
      %s15 = ssub.s32 2048, 2048
      %16 = vsyncadd [#allocation3], %s15
      %s17 = sshll.u32 [#allocation2], 4
      %s18 = int_to_ptr.vmem [resolvable:$true] %s17
      %23 = dma.hbm_to_vmem [thread:$0]  %s0, 2048, %s18, [#allocation3], 256, 256, 16
    $region5: #{tpu_custom_call.1} parent=1 // pred_fallthru
      _
    // Predicated region
    $region6: #{tpu_custom_call.1} parent=1 // pred_check
      _
    $region7: #{tpu_custom_call.1} parent=1 // pred_check_branch
      %25 = sbr.rel (0) target = $region9
    $region8: #{tpu_custom_call.1} parent=1 // pred_region
      _
    $region9: #{tpu_custom_call.1} parent=1 // pred_fallthru
      _
    // Predicated region
    $region10: #{tpu_custom_call.1} parent=1 // pred_check
      _
    $region11: #{tpu_custom_call.1} parent=1 // pred_check_branch
      %27 = sbr.rel (0) target = $region13
    $region12: #{tpu_custom_call.1} parent=1 // pred_region
      _
    $region13: #{tpu_custom_call.1} parent=1 // pred_fallthru
      _
    // Predicated region
    $region14: #{tpu_custom_call.1} parent=1 // pred_check
      _
    $region15: #{tpu_custom_call.1} parent=1 // pred_check_branch
      %29 = sbr.rel (0) target = $region17
    $region16: #{tpu_custom_call.1} parent=1 // pred_region
      _
    $region17: #{tpu_custom_call.1} parent=1 // pred_fallthru
      _
    // Predicated region
    $region18: #{tpu_custom_call.1} parent=1 // pred_check
      _
    $region19: #{tpu_custom_call.1} parent=1 // pred_check_branch
      %31 = sbr.rel (0) target = $region21
    $region20: #{tpu_custom_call.1} parent=1 // pred_region
      _
    $region21: #{tpu_custom_call.1} parent=1 // pred_fallthru
      _
    // Predicated region
    $region22: #{tpu_custom_call.1} parent=1 // pred_check
      _
    $region23: #{tpu_custom_call.1} parent=1 // pred_check_branch
      %33 = sbr.rel (0) target = $region25
    $region24: #{tpu_custom_call.1} parent=1 // pred_region
      %34 = dma.done [#allocation3], 2048
    $region25: #{tpu_custom_call.1} parent=1 // pred_fallthru
      _
    %v36 = vld [vmem:[%s4] sm:$0xff]
    %v37 = vld [vmem:[%s4 + $0x8] sm:$0xff]
    %v38 = vld [vmem:[%s4 + $0x10] sm:$0xff]
    %v39 = vld [vmem:[%s4 + $0x18] sm:$0xff]
    %v40 = vld [vmem:[%s4 + $0x20] sm:$0xff]
    %v41 = vld [vmem:[%s4 + $0x28] sm:$0xff]
    %v42 = vld [vmem:[%s4 + $0x30] sm:$0xff]
    %v43 = vld [vmem:[%s4 + $0x38] sm:$0xff]
    %v44 = vld [vmem:[%s4 + $0x40] sm:$0xff]
    %v45 = vld [vmem:[%s4 + $0x48] sm:$0xff]
    %v46 = vld [vmem:[%s4 + $0x50] sm:$0xff]
    %v47 = vld [vmem:[%s4 + $0x58] sm:$0xff]
    %v48 = vld [vmem:[%s4 + $0x60] sm:$0xff]
    %v49 = vld [vmem:[%s4 + $0x68] sm:$0xff]
    %v50 = vld [vmem:[%s4 + $0x70] sm:$0xff]
    %v51 = vld [vmem:[%s4 + $0x78] sm:$0xff]
    %v52 = vld [vmem:[%s4 + $0x80] sm:$0xff]
    %v53 = vld [vmem:[%s4 + $0x88] sm:$0xff]
    %v54 = vld [vmem:[%s4 + $0x90] sm:$0xff]
    %v55 = vld [vmem:[%s4 + $0x98] sm:$0xff]
    %v56 = vld [vmem:[%s4 + $0xa0] sm:$0xff]
    %v57 = vld [vmem:[%s4 + $0xa8] sm:$0xff]
    %v58 = vld [vmem:[%s4 + $0xb0] sm:$0xff]
    %v59 = vld [vmem:[%s4 + $0xb8] sm:$0xff]
    %v60 = vld [vmem:[%s4 + $0xc0] sm:$0xff]
    %v61 = vld [vmem:[%s4 + $0xc8] sm:$0xff]
    %v62 = vld [vmem:[%s4 + $0xd0] sm:$0xff]
    %v63 = vld [vmem:[%s4 + $0xd8] sm:$0xff]
    %v64 = vld [vmem:[#allocation2] sm:$0xff]
    %v65 = vld [vmem:[#allocation2 + $0x8] sm:$0xff]
    %v66 = vld [vmem:[#allocation2 + $0x10] sm:$0xff]
    %v67 = vld [vmem:[#allocation2 + $0x18] sm:$0xff]
    %v68 = vld [vmem:[#allocation2 + $0x20] sm:$0xff]
    %v69 = vld [vmem:[#allocation2 + $0x28] sm:$0xff]
    %v70 = vld [vmem:[#allocation2 + $0x30] sm:$0xff]
    %v71 = vld [vmem:[#allocation2 + $0x38] sm:$0xff]
    %v72 = vld [vmem:[#allocation2 + $0x40] sm:$0xff]
    %v73 = vld [vmem:[#allocation2 + $0x48] sm:$0xff]
    %v74 = vld [vmem:[#allocation2 + $0x50] sm:$0xff]
    %v75 = vld [vmem:[#allocation2 + $0x58] sm:$0xff]
    %v76 = vld [vmem:[#allocation2 + $0x60] sm:$0xff]
    %v77 = vld [vmem:[#allocation2 + $0x68] sm:$0xff]
    %v78 = vld [vmem:[#allocation2 + $0x70] sm:$0xff]
    %v79 = vld [vmem:[#allocation2 + $0x78] sm:$0xff]
    %v80 = vpack.c.bf16 %v66, %v64
    %v81 = vpack.c.bf16 %v67, %v65
    %v82 = vpack.c.bf16 %v70, %v68
    %v83 = vpack.c.bf16 %v71, %v69
    %v84 = vpack.c.bf16 %v74, %v72
    %v85 = vpack.c.bf16 %v75, %v73
    %v86 = vpack.c.bf16 %v78, %v76
    %v87 = vpack.c.bf16 %v79, %v77
    %v88 = vld [vmem:[%s1] sm:$0xff]
    %v89 = vld [vmem:[%s1 + $0x8] sm:$0xff]
    %v90 = vld [vmem:[%s1 + $0x10] sm:$0xff]
    %v91 = vld [vmem:[%s1 + $0x18] sm:$0xff]
    %v92 = vld [vmem:[%s1 + $0x20] sm:$0xff]
    %v93 = vld [vmem:[%s1 + $0x28] sm:$0xff]
    %v94 = vld [vmem:[%s1 + $0x30] sm:$0xff]
    %v95 = vld [vmem:[%s1 + $0x38] sm:$0xff]
    %v96 = vld [vmem:[%s1 + $0x40] sm:$0xff]
    %v97 = vld [vmem:[%s1 + $0x48] sm:$0xff]
    %v98 = vld [vmem:[%s1 + $0x50] sm:$0xff]
    %v99 = vld [vmem:[%s1 + $0x58] sm:$0xff]
    %v100 = vld [vmem:[%s1 + $0x60] sm:$0xff]
    %v101 = vld [vmem:[%s1 + $0x68] sm:$0xff]
    %v102 = vld [vmem:[%s1 + $0x70] sm:$0xff]
    %v103 = vld [vmem:[%s1 + $0x78] sm:$0xff]
    %v104 = vld [vmem:[%s1 + $0x80] sm:$0xff]
    %v105 = vld [vmem:[%s1 + $0x88] sm:$0xff]
    %v106 = vld [vmem:[%s1 + $0x90] sm:$0xff]
    %v107 = vld [vmem:[%s1 + $0x98] sm:$0xff]
    %v108 = vld [vmem:[%s1 + $0xa0] sm:$0xff]
    %v109 = vld [vmem:[%s1 + $0xa8] sm:$0xff]
    %v110 = vld [vmem:[%s1 + $0xb0] sm:$0xff]
    %v111 = vld [vmem:[%s1 + $0xb8] sm:$0xff]
    %v112 = vld [vmem:[%s1 + $0xc0] sm:$0xff]
    %v113 = vld [vmem:[%s1 + $0xc8] sm:$0xff]
    %v114 = vld [vmem:[%s1 + $0xd0] sm:$0xff]
    %v115 = vld [vmem:[%s1 + $0xd8] sm:$0xff]
    %v116 = vld [vmem:[%s1 + $0xe0] sm:$0xff]
    %v117 = vld [vmem:[%s1 + $0xe8] sm:$0xff]
    %v118 = vld [vmem:[%s1 + $0xf0] sm:$0xff]
    %v119 = vld [vmem:[%s1 + $0xf8] sm:$0xff]
    %v152 = vunpack.c.l.b16 %v88
    %v153 = vunpack.c.h.b16 %v88
    %v154 = vunpack.c.l.b16 %v89
    %v155 = vunpack.c.h.b16 %v89
    %v156 = vunpack.c.l.b16 %v90
    %v157 = vunpack.c.h.b16 %v90
    %v158 = vunpack.c.l.b16 %v91
    %v159 = vunpack.c.h.b16 %v91
    %v160 = vunpack.c.l.b16 %v92
    %v161 = vunpack.c.h.b16 %v92
    %v162 = vunpack.c.l.b16 %v93
    %v163 = vunpack.c.h.b16 %v93
    %v164 = vunpack.c.l.b16 %v94
    %v165 = vunpack.c.h.b16 %v94
    %v166 = vunpack.c.l.b16 %v95
    %v167 = vunpack.c.h.b16 %v95
    %v168 = vunpack.c.l.b16 %v96
    %v169 = vunpack.c.h.b16 %v96
    %v170 = vunpack.c.l.b16 %v97
    %v171 = vunpack.c.h.b16 %v97
    %v172 = vunpack.c.l.b16 %v98
    %v173 = vunpack.c.h.b16 %v98
    %v174 = vunpack.c.l.b16 %v99
    %v175 = vunpack.c.h.b16 %v99
    %v176 = vunpack.c.l.b16 %v100
    %v177 = vunpack.c.h.b16 %v100
    %v178 = vunpack.c.l.b16 %v101
    %v179 = vunpack.c.h.b16 %v101
    %v180 = vunpack.c.l.b16 %v102
    %v181 = vunpack.c.h.b16 %v102
    %v182 = vunpack.c.l.b16 %v103
    %v183 = vunpack.c.h.b16 %v103
    %v184 = vunpack.c.l.b16 %v104
    %v185 = vunpack.c.h.b16 %v104
    %v186 = vunpack.c.l.b16 %v105
    %v187 = vunpack.c.h.b16 %v105
    %v188 = vunpack.c.l.b16 %v106
    %v189 = vunpack.c.h.b16 %v106
    %v190 = vunpack.c.l.b16 %v107
    %v191 = vunpack.c.h.b16 %v107
    %v192 = vunpack.c.l.b16 %v108
    %v193 = vunpack.c.h.b16 %v108
    %v194 = vunpack.c.l.b16 %v109
    %v195 = vunpack.c.h.b16 %v109
    %v196 = vunpack.c.l.b16 %v110
    %v197 = vunpack.c.h.b16 %v110
    %v198 = vunpack.c.l.b16 %v111
    %v199 = vunpack.c.h.b16 %v111
    %v200 = vunpack.c.l.b16 %v112
    %v201 = vunpack.c.h.b16 %v112
    %v202 = vunpack.c.l.b16 %v113
    %v203 = vunpack.c.h.b16 %v113
    %v204 = vunpack.c.l.b16 %v114
    %v205 = vunpack.c.h.b16 %v114
    %v206 = vunpack.c.l.b16 %v115
    %v207 = vunpack.c.h.b16 %v115
    %v208 = vunpack.c.l.b16 %v116
    %v209 = vunpack.c.h.b16 %v116
    %v210 = vunpack.c.l.b16 %v117
    %v211 = vunpack.c.h.b16 %v117
    %v212 = vunpack.c.l.b16 %v118
    %v213 = vunpack.c.h.b16 %v118
    %v214 = vunpack.c.l.b16 %v119
    %v215 = vunpack.c.h.b16 %v119
    %v216 = vpack.c.b16 %v154, %v152
    %v217 = vpack.c.b16 %v155, %v153
    %v218 = vpack.c.b16 %v158, %v156
    %v219 = vpack.c.b16 %v159, %v157
    %v220 = vpack.c.b16 %v162, %v160
    %v221 = vpack.c.b16 %v163, %v161
    %v222 = vpack.c.b16 %v166, %v164
    %v223 = vpack.c.b16 %v167, %v165
    %v224 = vpack.c.b16 %v170, %v168
    %v225 = vpack.c.b16 %v171, %v169
    %v226 = vpack.c.b16 %v174, %v172
    %v227 = vpack.c.b16 %v175, %v173
    %v228 = vpack.c.b16 %v178, %v176
    %v229 = vpack.c.b16 %v179, %v177
    %v230 = vpack.c.b16 %v182, %v180
    %v231 = vpack.c.b16 %v183, %v181
    %v232 = vpack.c.b16 %v186, %v184
    %v233 = vpack.c.b16 %v187, %v185
    %v234 = vpack.c.b16 %v190, %v188
    %v235 = vpack.c.b16 %v191, %v189
    %v236 = vpack.c.b16 %v194, %v192
    %v237 = vpack.c.b16 %v195, %v193
    %v238 = vpack.c.b16 %v198, %v196
    %v239 = vpack.c.b16 %v199, %v197
    %v240 = vpack.c.b16 %v202, %v200
    %v241 = vpack.c.b16 %v203, %v201
    %v242 = vpack.c.b16 %v206, %v204
    %v243 = vpack.c.b16 %v207, %v205
    %v244 = vpack.c.b16 %v210, %v208
    %v245 = vpack.c.b16 %v211, %v209
    %v246 = vpack.c.b16 %v214, %v212
    %v247 = vpack.c.b16 %v215, %v213
    %280 = vmatprep.subr.bf16.mxu0 %v217
    %281 = vmatpush1.bf16.msra.mxu0 %v216
    %282 = vmatprep.subr.bf16.mxu0 %v219
    %283 = vmatpush1.bf16.msra.mxu0 %v218
    %284 = vmatprep.subr.bf16.mxu0 %v221
    %285 = vmatpush1.bf16.msra.mxu0 %v220
    %286 = vmatprep.subr.bf16.mxu0 %v223
    %287 = vmatpush1.bf16.msra.mxu0 %v222
    %288 = vmatprep.subr.bf16.mxu0 %v225
    %289 = vmatpush1.bf16.msra.mxu0 %v224
    %290 = vmatprep.subr.bf16.mxu0 %v227
    %291 = vmatpush1.bf16.msra.mxu0 %v226
    %292 = vmatprep.subr.bf16.mxu0 %v229
    %293 = vmatpush1.bf16.msra.mxu0 %v228
    %294 = vmatprep.subr.bf16.mxu0 %v231
    %295 = vmatpush1.bf16.msra.mxu0 %v230
    %296 = vmatprep.subr.bf16.mxu0 %v233
    %297 = vmatpush1.bf16.msra.mxu0 %v232
    %298 = vmatprep.subr.bf16.mxu0 %v235
    %299 = vmatpush1.bf16.msra.mxu0 %v234
    %300 = vmatprep.subr.bf16.mxu0 %v237
    %301 = vmatpush1.bf16.msra.mxu0 %v236
    %302 = vmatprep.subr.bf16.mxu0 %v239
    %303 = vmatpush1.bf16.msra.mxu0 %v238
    %304 = vmatprep.subr.bf16.mxu0 %v241
    %305 = vmatpush1.bf16.msra.mxu0 %v240
    %306 = vmatprep.subr.bf16.mxu0 %v243
    %307 = vmatpush1.bf16.msra.mxu0 %v242
    %308 = vmatprep.subr.bf16.mxu0 %v245
    %309 = vmatpush1.bf16.msra.mxu0 %v244
    %310 = vmatprep.subr.bf16.mxu0 %v247
    %311 = vmatpush1.bf16.msra.mxu0 %v246
    %312 = vmatprep.mubr.bf16.mxu0 %v81
    %313 = vmatmul.mubr.bf16.gmra.mrb[0].mxu0 %v80
    %v314 = vpop.f32.mrb[0].mxu0
    %v315 = vadd.f32 0.0, %v314
    %v316 = vpop.f32.mrb[0].mxu0
    %v317 = vadd.f32 0.0, %v316
    %v318 = vpop.f32.mrb[0].mxu0
    %v319 = vadd.f32 0.0, %v318
    %v320 = vpop.f32.mrb[0].mxu0
    %v321 = vadd.f32 0.0, %v320
    %322 = vmatprep.mubr.bf16.mxu0 %v83
    %323 = vmatmul.mubr.bf16.gmra.mrb[0].mxu0 %v82
    %v324 = vpop.f32.mrb[0].mxu0
    %v325 = vadd.f32 0.0, %v324
    %v326 = vpop.f32.mrb[0].mxu0
    %v327 = vadd.f32 0.0, %v326
    %v328 = vpop.f32.mrb[0].mxu0
    %v329 = vadd.f32 0.0, %v328
    %v330 = vpop.f32.mrb[0].mxu0
    %v331 = vadd.f32 0.0, %v330
    %332 = vmatprep.mubr.bf16.mxu0 %v85
    %333 = vmatmul.mubr.bf16.gmra.mrb[0].mxu0 %v84
    %v334 = vpop.f32.mrb[0].mxu0
    %v335 = vadd.f32 0.0, %v334
    %v336 = vpop.f32.mrb[0].mxu0
    %v337 = vadd.f32 0.0, %v336
    %v338 = vpop.f32.mrb[0].mxu0
    %v339 = vadd.f32 0.0, %v338
    %v340 = vpop.f32.mrb[0].mxu0
    %v341 = vadd.f32 0.0, %v340
    %342 = vmatprep.mubr.bf16.mxu0 %v87
    %343 = vmatmul.mubr.bf16.gmra.mrb[0].mxu0 %v86
    %v344 = vpop.f32.mrb[0].mxu0
    %v345 = vadd.f32 0.0, %v344
    %v346 = vpop.f32.mrb[0].mxu0
    %v347 = vadd.f32 0.0, %v346
    %v348 = vpop.f32.mrb[0].mxu0
    %v349 = vadd.f32 0.0, %v348
    %v350 = vpop.f32.mrb[0].mxu0
    %v351 = vadd.f32 0.0, %v350
    %352 = vdwg.mxu0
    %v353 = vsub.f32 %v315, %v64
    %v354 = vsub.f32 %v317, %v65
    %v355 = vsub.f32 %v319, %v66
    %v356 = vsub.f32 %v321, %v67
    %v357 = vsub.f32 %v325, %v68
    %v358 = vsub.f32 %v327, %v69
    %v359 = vsub.f32 %v329, %v70
    %v360 = vsub.f32 %v331, %v71
    %v361 = vsub.f32 %v335, %v72
    %v362 = vsub.f32 %v337, %v73
    %v363 = vsub.f32 %v339, %v74
    %v364 = vsub.f32 %v341, %v75
    %v365 = vsub.f32 %v345, %v76
    %v366 = vsub.f32 %v347, %v77
    %v367 = vsub.f32 %v349, %v78
    %v368 = vsub.f32 %v351, %v79
    %370 = vset.pattern.permute.xlu0 0
    %371 = vperm.xlu0 %370, %v56
    %v372 = vpop.permute.xlu0 %371
    %375 = vset.pattern.permute.xlu0 0
    %376 = vperm.xlu0 %375, %v57
    %v377 = vpop.permute.xlu0 %376
    %380 = vset.pattern.permute.xlu0 0
    %381 = vperm.xlu0 %380, %v58
    %v382 = vpop.permute.xlu0 %381
    %385 = vset.pattern.permute.xlu0 0
    %386 = vperm.xlu0 %385, %v59
    %v387 = vpop.permute.xlu0 %386
    %v389 = vmul.f32 %v353, %v372
    %v390 = vmul.f32 %v354, %v372
    %v391 = vmul.f32 %v355, %v377
    %v392 = vmul.f32 %v356, %v377
    %v393 = vmul.f32 %v357, %v382
    %v394 = vmul.f32 %v358, %v382
    %v395 = vmul.f32 %v359, %v387
    %v396 = vmul.f32 %v360, %v387
    %v397 = vmul.f32 %v361, %v372
    %v398 = vmul.f32 %v362, %v372
    %v399 = vmul.f32 %v363, %v377
    %v400 = vmul.f32 %v364, %v377
    %v401 = vmul.f32 %v365, %v382
    %v402 = vmul.f32 %v366, %v382
    %v403 = vmul.f32 %v367, %v387
    %v404 = vmul.f32 %v368, %v387
    %v405 = vadd.f32 %v64, %v389
    %v406 = vadd.f32 %v65, %v390
    %v407 = vadd.f32 %v66, %v391
    %v408 = vadd.f32 %v67, %v392
    %v409 = vadd.f32 %v68, %v393
    %v410 = vadd.f32 %v69, %v394
    %v411 = vadd.f32 %v70, %v395
    %v412 = vadd.f32 %v71, %v396
    %v413 = vadd.f32 %v72, %v397
    %v414 = vadd.f32 %v73, %v398
    %v415 = vadd.f32 %v74, %v399
    %v416 = vadd.f32 %v75, %v400
    %v417 = vadd.f32 %v76, %v401
    %v418 = vadd.f32 %v77, %v402
    %v419 = vadd.f32 %v78, %v403
    %v420 = vadd.f32 %v79, %v404
    %v421 = vld [vmem:[%s2] sm:$0xf]
    %v422 = vld [vmem:[%s2 + $0x4] sm:$0xf]
    %v423 = vld [vmem:[%s2 + $0x8] sm:$0xf]
    %v424 = vld [vmem:[%s2 + $0xc] sm:$0xf]
    %v425 = vld [vmem:[%s2 + $0x10] sm:$0xf]
    %v426 = vld [vmem:[%s2 + $0x14] sm:$0xf]
    %v427 = vld [vmem:[%s2 + $0x18] sm:$0xf]
    %v428 = vld [vmem:[%s2 + $0x1c] sm:$0xf]
    %v429 = vld [vmem:[%s2 + $0x20] sm:$0xf]
    %v430 = vld [vmem:[%s2 + $0x24] sm:$0xf]
    %v431 = vld [vmem:[%s2 + $0x28] sm:$0xf]
    %v432 = vld [vmem:[%s2 + $0x2c] sm:$0xf]
    %v433 = vld [vmem:[%s2 + $0x30] sm:$0xf]
    %v434 = vld [vmem:[%s2 + $0x34] sm:$0xf]
    %v435 = vld [vmem:[%s2 + $0x38] sm:$0xf]
    %v436 = vld [vmem:[%s2 + $0x3c] sm:$0xf]
    %v437 = vpack.c.bf16 %v407, %v405
    %v438 = vpack.c.bf16 %v408, %v406
    %v439 = vpack.c.bf16 %v411, %v409
    %v440 = vpack.c.bf16 %v412, %v410
    %442 = vset.pattern.permute.xlu0 0
    %443 = vperm.xlu0 %442, %v36
    %v444 = vpop.permute.xlu0 %443
    %447 = vset.pattern.permute.xlu0 0
    %448 = vperm.xlu0 %447, %v37
    %v449 = vpop.permute.xlu0 %448
    %452 = vset.pattern.permute.xlu0 0
    %453 = vperm.xlu0 %452, %v38
    %v454 = vpop.permute.xlu0 %453
    %457 = vset.pattern.permute.xlu0 0
    %458 = vperm.xlu0 %457, %v39
    %v459 = vpop.permute.xlu0 %458
    %462 = vset.pattern.permute.xlu0 0
    %463 = vperm.xlu0 %462, %v40
    %v464 = vpop.permute.xlu0 %463
    %467 = vset.pattern.permute.xlu0 0
    %468 = vperm.xlu0 %467, %v41
    %v469 = vpop.permute.xlu0 %468
    %472 = vset.pattern.permute.xlu0 0
    %473 = vperm.xlu0 %472, %v42
    %v474 = vpop.permute.xlu0 %473
    %477 = vset.pattern.permute.xlu0 0
    %478 = vperm.xlu0 %477, %v43
    %v479 = vpop.permute.xlu0 %478
    %482 = vset.pattern.permute.xlu0 0
    %483 = vperm.xlu0 %482, %v44
    %v484 = vpop.permute.xlu0 %483
    %487 = vset.pattern.permute.xlu0 0
    %488 = vperm.xlu0 %487, %v45
    %v489 = vpop.permute.xlu0 %488
    %492 = vset.pattern.permute.xlu0 0
    %493 = vperm.xlu0 %492, %v46
    %v494 = vpop.permute.xlu0 %493
    %497 = vset.pattern.permute.xlu0 0
    %498 = vperm.xlu0 %497, %v47
    %v499 = vpop.permute.xlu0 %498
    %502 = vset.pattern.permute.xlu0 0
    %503 = vperm.xlu0 %502, %v48
    %v504 = vpop.permute.xlu0 %503
    %507 = vset.pattern.permute.xlu0 0
    %508 = vperm.xlu0 %507, %v49
    %v509 = vpop.permute.xlu0 %508
    %512 = vset.pattern.permute.xlu0 0
    %513 = vperm.xlu0 %512, %v50
    %v514 = vpop.permute.xlu0 %513
    %517 = vset.pattern.permute.xlu0 0
    %518 = vperm.xlu0 %517, %v51
    %v519 = vpop.permute.xlu0 %518
    %v537 = vunpack.c.l.b16 %v421
    %v538 = vunpack.c.l.b16 %v422
    %v539 = vunpack.c.l.b16 %v423
    %v540 = vunpack.c.l.b16 %v424
    %v541 = vunpack.c.l.b16 %v425
    %v542 = vunpack.c.l.b16 %v426
    %v543 = vunpack.c.l.b16 %v427
    %v544 = vunpack.c.l.b16 %v428
    %v545 = vunpack.c.l.b16 %v429
    %v546 = vunpack.c.l.b16 %v430
    %v547 = vunpack.c.l.b16 %v431
    %v548 = vunpack.c.l.b16 %v432
    %v549 = vunpack.c.l.b16 %v433
    %v550 = vunpack.c.l.b16 %v434
    %v551 = vunpack.c.l.b16 %v435
    %v552 = vunpack.c.l.b16 %v436
    %v553 = vpack.c.b16 %v538, %v537
    %v554 = vpack.c.b16 %v540, %v539
    %v555 = vpack.c.b16 %v542, %v541
    %v556 = vpack.c.b16 %v544, %v543
    %v557 = vpack.c.b16 %v546, %v545
    %v558 = vpack.c.b16 %v548, %v547
    %v559 = vpack.c.b16 %v550, %v549
    %v560 = vpack.c.b16 %v552, %v551
    %vm561 = vcmask 261120
    %v563 = vsel %vm561, %v553, 0
    %v566 = vsel %vm561, %v554, 0
    %v569 = vsel %vm561, %v555, 0
    %v572 = vsel %vm561, %v556, 0
    %v575 = vsel %vm561, %v557, 0
    %v578 = vsel %vm561, %v558, 0
    %v581 = vsel %vm561, %v559, 0
    %v584 = vsel %vm561, %v560, 0
    %586 = vmatprep.subr.bf16.mxu0 %v438
    %587 = vmatpush1.bf16.msra.mxu0 %v437
    %588 = vmatprep.subr.bf16.mxu0 %v440
    %589 = vmatpush1.bf16.msra.mxu0 %v439
    %590 = vmatprep.subr.bf16.mxu0 0
    %591 = vmatpush1.bf16.msra.mxu0 0
    %592 = vmatprep.subr.bf16.mxu0 0
    %593 = vmatpush1.bf16.msra.mxu0 0
    %594 = vmatprep.subr.bf16.mxu0 0
    %595 = vmatpush1.bf16.msra.mxu0 0
    %596 = vmatprep.subr.bf16.mxu0 0
    %597 = vmatpush1.bf16.msra.mxu0 0
    %598 = vmatprep.subr.bf16.mxu0 0
    %599 = vmatpush1.bf16.msra.mxu0 0
    %600 = vmatprep.subr.bf16.mxu0 0
    %601 = vmatpush1.bf16.msra.mxu0 0
    %602 = vmatprep.subr.bf16.mxu0 0
    %603 = vmatpush1.bf16.msra.mxu0 0
    %604 = vmatprep.subr.bf16.mxu0 0
    %605 = vmatpush1.bf16.msra.mxu0 0
    %606 = vmatprep.subr.bf16.mxu0 0
    %607 = vmatpush1.bf16.msra.mxu0 0
    %608 = vmatprep.subr.bf16.mxu0 0
    %609 = vmatpush1.bf16.msra.mxu0 0
    %610 = vmatprep.subr.bf16.mxu0 0
    %611 = vmatpush1.bf16.msra.mxu0 0
    %612 = vmatprep.subr.bf16.mxu0 0
    %613 = vmatpush1.bf16.msra.mxu0 0
    %614 = vmatprep.subr.bf16.mxu0 0
    %615 = vmatpush1.bf16.msra.mxu0 0
    %616 = vmatprep.subr.bf16.mxu0 0
    %617 = vmatpush1.bf16.msra.mxu0 0
    %618 = vmatprep.mubr.bf16.mxu0 0
    %619 = vmatmul.mubr.bf16.gmra.mrb[0].mxu0 %v563
    %v620 = vpop.f32.mrb[0].mxu0
    %v621 = vadd.f32 %v444, %v620
    %v622 = vpop.f32.mrb[0].mxu0
    %v623 = vadd.f32 %v444, %v622
    %v624 = vpop.f32.mrb[0].mxu0
    %v625 = vadd.f32 %v449, %v624
    %v626 = vpop.f32.mrb[0].mxu0
    %v627 = vadd.f32 %v449, %v626
    %628 = vmatprep.mubr.bf16.mxu0 0
    %629 = vmatmul.mubr.bf16.gmra.mrb[0].mxu0 %v566
    %v630 = vpop.f32.mrb[0].mxu0
    %v631 = vadd.f32 %v454, %v630
    %v632 = vpop.f32.mrb[0].mxu0
    %v633 = vadd.f32 %v454, %v632
    %v634 = vpop.f32.mrb[0].mxu0
    %v635 = vadd.f32 %v459, %v634
    %v636 = vpop.f32.mrb[0].mxu0
    %v637 = vadd.f32 %v459, %v636
    %638 = vmatprep.mubr.bf16.mxu0 0
    %639 = vmatmul.mubr.bf16.gmra.mrb[0].mxu0 %v569
    %v640 = vpop.f32.mrb[0].mxu0
    %v641 = vadd.f32 %v464, %v640
    %v642 = vpop.f32.mrb[0].mxu0
    %v643 = vadd.f32 %v464, %v642
    %v644 = vpop.f32.mrb[0].mxu0
    %v645 = vadd.f32 %v469, %v644
    %v646 = vpop.f32.mrb[0].mxu0
    %v647 = vadd.f32 %v469, %v646
    %648 = vmatprep.mubr.bf16.mxu0 0
    %649 = vmatmul.mubr.bf16.gmra.mrb[0].mxu0 %v572
    %v650 = vpop.f32.mrb[0].mxu0
    %v651 = vadd.f32 %v474, %v650
    %v652 = vpop.f32.mrb[0].mxu0
    %v653 = vadd.f32 %v474, %v652
    %v654 = vpop.f32.mrb[0].mxu0
    %v655 = vadd.f32 %v479, %v654
    %v656 = vpop.f32.mrb[0].mxu0
    %v657 = vadd.f32 %v479, %v656
    %658 = vmatprep.mubr.bf16.mxu0 0
    %659 = vmatmul.mubr.bf16.gmra.mrb[0].mxu0 %v575
    %v660 = vpop.f32.mrb[0].mxu0
    %v661 = vadd.f32 %v484, %v660
    %v662 = vpop.f32.mrb[0].mxu0
    %v663 = vadd.f32 %v484, %v662
    %v664 = vpop.f32.mrb[0].mxu0
    %v665 = vadd.f32 %v489, %v664
    %v666 = vpop.f32.mrb[0].mxu0
    %v667 = vadd.f32 %v489, %v666
    %668 = vmatprep.mubr.bf16.mxu0 0
    %669 = vmatmul.mubr.bf16.gmra.mrb[0].mxu0 %v578
    %v670 = vpop.f32.mrb[0].mxu0
    %v671 = vadd.f32 %v494, %v670
    %v672 = vpop.f32.mrb[0].mxu0
    %v673 = vadd.f32 %v494, %v672
    %v674 = vpop.f32.mrb[0].mxu0
    %v675 = vadd.f32 %v499, %v674
    %v676 = vpop.f32.mrb[0].mxu0
    %v677 = vadd.f32 %v499, %v676
    %678 = vmatprep.mubr.bf16.mxu0 0
    %679 = vmatmul.mubr.bf16.gmra.mrb[0].mxu0 %v581
    %v680 = vpop.f32.mrb[0].mxu0
    %v681 = vadd.f32 %v504, %v680
    %v682 = vpop.f32.mrb[0].mxu0
    %v683 = vadd.f32 %v504, %v682
    %v684 = vpop.f32.mrb[0].mxu0
    %v685 = vadd.f32 %v509, %v684
    %v686 = vpop.f32.mrb[0].mxu0
    %v687 = vadd.f32 %v509, %v686
    %688 = vmatprep.mubr.bf16.mxu0 0
    %689 = vmatmul.mubr.bf16.gmra.mrb[0].mxu0 %v584
    %v690 = vpop.f32.mrb[0].mxu0
    %v691 = vadd.f32 %v514, %v690
    %v692 = vpop.f32.mrb[0].mxu0
    %v693 = vadd.f32 %v514, %v692
    %v694 = vpop.f32.mrb[0].mxu0
    %v695 = vadd.f32 %v519, %v694
    %v696 = vpop.f32.mrb[0].mxu0
    %v697 = vadd.f32 %v519, %v696
    %698 = vdwg.mxu0
    %v699 = vpack.c.bf16 %v625, %v621
    %v700 = vpack.c.bf16 %v627, %v623
    %v701 = vpack.c.bf16 %v635, %v631
    %v702 = vpack.c.bf16 %v637, %v633
    %v703 = vpack.c.bf16 %v645, %v641
    %v704 = vpack.c.bf16 %v647, %v643
    %v705 = vpack.c.bf16 %v655, %v651
    %v706 = vpack.c.bf16 %v657, %v653
    %v707 = vpack.c.bf16 %v665, %v661
    %v708 = vpack.c.bf16 %v667, %v663
    %v709 = vpack.c.bf16 %v675, %v671
    %v710 = vpack.c.bf16 %v677, %v673
    %v711 = vpack.c.bf16 %v685, %v681
    %v712 = vpack.c.bf16 %v687, %v683
    %v713 = vpack.c.bf16 %v695, %v691
    %v714 = vpack.c.bf16 %v697, %v693
    %v715 = vmax.bf16 %v699, 0
    %v716 = vmax.bf16 %v700, 0
    %v717 = vmax.bf16 %v701, 0
    %v718 = vmax.bf16 %v702, 0
    %v719 = vmax.bf16 %v703, 0
    %v720 = vmax.bf16 %v704, 0
    %v721 = vmax.bf16 %v705, 0
    %v722 = vmax.bf16 %v706, 0
    %v723 = vmax.bf16 %v707, 0
    %v724 = vmax.bf16 %v708, 0
    %v725 = vmax.bf16 %v709, 0
    %v726 = vmax.bf16 %v710, 0
    %v727 = vmax.bf16 %v711, 0
    %v728 = vmax.bf16 %v712, 0
    %v729 = vmax.bf16 %v713, 0
    %v730 = vmax.bf16 %v714, 0
    %v731 = vld [vmem:[%s3] sm:$0xf]
    %v732 = vld [vmem:[%s3 + $0x4] sm:$0xf]
    %v733 = vld [vmem:[%s3 + $0x8] sm:$0xf]
    %v734 = vld [vmem:[%s3 + $0xc] sm:$0xf]
    %736 = vset.pattern.permute.xlu0 0
    %737 = vperm.xlu0 %736, %v52
    %v738 = vpop.permute.xlu0 %737
    %741 = vset.pattern.permute.xlu0 0
    %742 = vperm.xlu0 %741, %v53
    %v743 = vpop.permute.xlu0 %742
    %746 = vset.pattern.permute.xlu0 0
    %747 = vperm.xlu0 %746, %v54
    %v748 = vpop.permute.xlu0 %747
    %751 = vset.pattern.permute.xlu0 0
    %752 = vperm.xlu0 %751, %v55
    %v753 = vpop.permute.xlu0 %752
    %v759 = vunpack.c.l.b16 %v731
    %v760 = vunpack.c.l.b16 %v732
    %v761 = vunpack.c.l.b16 %v733
    %v762 = vunpack.c.l.b16 %v734
    %v763 = vpack.c.b16 %v760, %v759
    %v764 = vpack.c.b16 %v762, %v761
    %767 = vmatprep.subr.bf16.mxu0 %v716
    %768 = vmatpush1.bf16.msra.mxu0 %v715
    %769 = vmatprep.subr.bf16.mxu0 %v718
    %770 = vmatpush1.bf16.msra.mxu0 %v717
    %771 = vmatprep.subr.bf16.mxu0 %v720
    %772 = vmatpush1.bf16.msra.mxu0 %v719
    %773 = vmatprep.subr.bf16.mxu0 %v722
    %774 = vmatpush1.bf16.msra.mxu0 %v721
    %775 = vmatprep.subr.bf16.mxu0 %v724
    %776 = vmatpush1.bf16.msra.mxu0 %v723
    %777 = vmatprep.subr.bf16.mxu0 %v726
    %778 = vmatpush1.bf16.msra.mxu0 %v725
    %779 = vmatprep.subr.bf16.mxu0 %v728
    %780 = vmatpush1.bf16.msra.mxu0 %v727
    %781 = vmatprep.subr.bf16.mxu0 %v730
    %782 = vmatpush1.bf16.msra.mxu0 %v729
    %783 = vmatprep.subr.bf16.mxu0 0
    %784 = vmatpush1.bf16.msra.mxu0 0
    %785 = vmatprep.subr.bf16.mxu0 0
    %786 = vmatpush1.bf16.msra.mxu0 0
    %787 = vmatprep.subr.bf16.mxu0 0
    %788 = vmatpush1.bf16.msra.mxu0 0
    %789 = vmatprep.subr.bf16.mxu0 0
    %790 = vmatpush1.bf16.msra.mxu0 0
    %791 = vmatprep.subr.bf16.mxu0 0
    %792 = vmatpush1.bf16.msra.mxu0 0
    %793 = vmatprep.subr.bf16.mxu0 0
    %794 = vmatpush1.bf16.msra.mxu0 0
    %795 = vmatprep.subr.bf16.mxu0 0
    %796 = vmatpush1.bf16.msra.mxu0 0
    %797 = vmatprep.subr.bf16.mxu0 0
    %798 = vmatpush1.bf16.msra.mxu0 0
    %799 = vmatprep.mubr.bf16.mxu0 0
    %800 = vmatmul.mubr.bf16.gmra.mrb[0].mxu0 %v763
    %v801 = vpop.f32.mrb[0].mxu0
    %v802 = vadd.f32 %v738, %v801
    %v803 = vpop.f32.mrb[0].mxu0
    %v804 = vadd.f32 %v738, %v803
    %v805 = vpop.f32.mrb[0].mxu0
    %v806 = vadd.f32 %v743, %v805
    %v807 = vpop.f32.mrb[0].mxu0
    %v808 = vadd.f32 %v743, %v807
    %809 = vmatprep.mubr.bf16.mxu0 0
    %810 = vmatmul.mubr.bf16.gmra.mrb[0].mxu0 %v764
    %v811 = vpop.f32.mrb[0].mxu0
    %v812 = vadd.f32 %v748, %v811
    %v813 = vpop.f32.mrb[0].mxu0
    %v814 = vadd.f32 %v748, %v813
    %v815 = vpop.f32.mrb[0].mxu0
    %v816 = vadd.f32 %v753, %v815
    %v817 = vpop.f32.mrb[0].mxu0
    %v818 = vadd.f32 %v753, %v817
    %819 = vdwg.mxu0
    %821 = vset.pattern.permute.xlu0 0
    %822 = vperm.xlu0 %821, %v60
    %v823 = vpop.permute.xlu0 %822
    %826 = vset.pattern.permute.xlu0 0
    %827 = vperm.xlu0 %826, %v61
    %v828 = vpop.permute.xlu0 %827
    %831 = vset.pattern.permute.xlu0 0
    %832 = vperm.xlu0 %831, %v62
    %v833 = vpop.permute.xlu0 %832
    %836 = vset.pattern.permute.xlu0 0
    %837 = vperm.xlu0 %836, %v63
    %v838 = vpop.permute.xlu0 %837
    %v840 = vmul.f32 %v802, %v823
    %v841 = vmul.f32 %v804, %v823
    %v842 = vmul.f32 %v806, %v828
    %v843 = vmul.f32 %v808, %v828
    %v844 = vmul.f32 %v812, %v833
    %v845 = vmul.f32 %v814, %v833
    %v846 = vmul.f32 %v816, %v838
    %v847 = vmul.f32 %v818, %v838
    %v848 = vadd.f32 %v405, %v840
    %v849 = vadd.f32 %v406, %v841
    %v850 = vadd.f32 %v407, %v842
    %v851 = vadd.f32 %v408, %v843
    %v852 = vadd.f32 %v409, %v844
    %v853 = vadd.f32 %v410, %v845
    %v854 = vadd.f32 %v411, %v846
    %v855 = vadd.f32 %v412, %v847
    %856 = vst [vmem:[#allocation5] sm:$0xff] %v848
    %857 = vst [vmem:[#allocation5 + $0x8] sm:$0xff] %v849
    %858 = vst [vmem:[#allocation5 + $0x10] sm:$0xff] %v850
    %859 = vst [vmem:[#allocation5 + $0x18] sm:$0xff] %v851
    %860 = vst [vmem:[#allocation5 + $0x20] sm:$0xff] %v852
    %861 = vst [vmem:[#allocation5 + $0x28] sm:$0xff] %v853
    %862 = vst [vmem:[#allocation5 + $0x30] sm:$0xff] %v854
    %863 = vst [vmem:[#allocation5 + $0x38] sm:$0xff] %v855
    %v864 = vld [vmem:[%s2] sm:$0xf]
    %v865 = vld [vmem:[%s2 + $0x4] sm:$0xf]
    %v866 = vld [vmem:[%s2 + $0x8] sm:$0xf]
    %v867 = vld [vmem:[%s2 + $0xc] sm:$0xf]
    %v868 = vld [vmem:[%s2 + $0x10] sm:$0xf]
    %v869 = vld [vmem:[%s2 + $0x14] sm:$0xf]
    %v870 = vld [vmem:[%s2 + $0x18] sm:$0xf]
    %v871 = vld [vmem:[%s2 + $0x1c] sm:$0xf]
    %v872 = vld [vmem:[%s2 + $0x20] sm:$0xf]
    %v873 = vld [vmem:[%s2 + $0x24] sm:$0xf]
    %v874 = vld [vmem:[%s2 + $0x28] sm:$0xf]
    %v875 = vld [vmem:[%s2 + $0x2c] sm:$0xf]
    %v876 = vld [vmem:[%s2 + $0x30] sm:$0xf]
    %v877 = vld [vmem:[%s2 + $0x34] sm:$0xf]
    %v878 = vld [vmem:[%s2 + $0x38] sm:$0xf]
    %v879 = vld [vmem:[%s2 + $0x3c] sm:$0xf]
    %v880 = vpack.c.bf16 %v415, %v413
    %v881 = vpack.c.bf16 %v416, %v414
    %v882 = vpack.c.bf16 %v419, %v417
    %v883 = vpack.c.bf16 %v420, %v418
    %v900 = vunpack.c.l.b16 %v864
    %v901 = vunpack.c.l.b16 %v865
    %v902 = vunpack.c.l.b16 %v866
    %v903 = vunpack.c.l.b16 %v867
    %v904 = vunpack.c.l.b16 %v868
    %v905 = vunpack.c.l.b16 %v869
    %v906 = vunpack.c.l.b16 %v870
    %v907 = vunpack.c.l.b16 %v871
    %v908 = vunpack.c.l.b16 %v872
    %v909 = vunpack.c.l.b16 %v873
    %v910 = vunpack.c.l.b16 %v874
    %v911 = vunpack.c.l.b16 %v875
    %v912 = vunpack.c.l.b16 %v876
    %v913 = vunpack.c.l.b16 %v877
    %v914 = vunpack.c.l.b16 %v878
    %v915 = vunpack.c.l.b16 %v879
    %v916 = vpack.c.b16 %v901, %v900
    %v917 = vpack.c.b16 %v903, %v902
    %v918 = vpack.c.b16 %v905, %v904
    %v919 = vpack.c.b16 %v907, %v906
    %v920 = vpack.c.b16 %v909, %v908
    %v921 = vpack.c.b16 %v911, %v910
    %v922 = vpack.c.b16 %v913, %v912
    %v923 = vpack.c.b16 %v915, %v914
    %v925 = vsel %vm561, %v916, 0
    %v928 = vsel %vm561, %v917, 0
    %v931 = vsel %vm561, %v918, 0
    %v934 = vsel %vm561, %v919, 0
    %v937 = vsel %vm561, %v920, 0
    %v940 = vsel %vm561, %v921, 0
    %v943 = vsel %vm561, %v922, 0
    %v946 = vsel %vm561, %v923, 0
    %948 = vmatprep.subr.bf16.mxu0 %v881
    %949 = vmatpush1.bf16.msra.mxu0 %v880
    %950 = vmatprep.subr.bf16.mxu0 %v883
    %951 = vmatpush1.bf16.msra.mxu0 %v882
    %952 = vmatprep.subr.bf16.mxu0 0
    %953 = vmatpush1.bf16.msra.mxu0 0
    %954 = vmatprep.subr.bf16.mxu0 0
    %955 = vmatpush1.bf16.msra.mxu0 0
    %956 = vmatprep.subr.bf16.mxu0 0
    %957 = vmatpush1.bf16.msra.mxu0 0
    %958 = vmatprep.subr.bf16.mxu0 0
    %959 = vmatpush1.bf16.msra.mxu0 0
    %960 = vmatprep.subr.bf16.mxu0 0
    %961 = vmatpush1.bf16.msra.mxu0 0
    %962 = vmatprep.subr.bf16.mxu0 0
    %963 = vmatpush1.bf16.msra.mxu0 0
    %964 = vmatprep.subr.bf16.mxu0 0
    %965 = vmatpush1.bf16.msra.mxu0 0
    %966 = vmatprep.subr.bf16.mxu0 0
    %967 = vmatpush1.bf16.msra.mxu0 0
    %968 = vmatprep.subr.bf16.mxu0 0
    %969 = vmatpush1.bf16.msra.mxu0 0
    %970 = vmatprep.subr.bf16.mxu0 0
    %971 = vmatpush1.bf16.msra.mxu0 0
    %972 = vmatprep.subr.bf16.mxu0 0
    %973 = vmatpush1.bf16.msra.mxu0 0
    %974 = vmatprep.subr.bf16.mxu0 0
    %975 = vmatpush1.bf16.msra.mxu0 0
    %976 = vmatprep.subr.bf16.mxu0 0
    %977 = vmatpush1.bf16.msra.mxu0 0
    %978 = vmatprep.subr.bf16.mxu0 0
    %979 = vmatpush1.bf16.msra.mxu0 0
    %980 = vmatprep.mubr.bf16.mxu0 0
    %981 = vmatmul.mubr.bf16.gmra.mrb[0].mxu0 %v925
    %v982 = vpop.f32.mrb[0].mxu0
    %v983 = vadd.f32 %v444, %v982
    %v984 = vpop.f32.mrb[0].mxu0
    %v985 = vadd.f32 %v444, %v984
    %v986 = vpop.f32.mrb[0].mxu0
    %v987 = vadd.f32 %v449, %v986
    %v988 = vpop.f32.mrb[0].mxu0
    %v989 = vadd.f32 %v449, %v988
    %990 = vmatprep.mubr.bf16.mxu0 0
    %991 = vmatmul.mubr.bf16.gmra.mrb[0].mxu0 %v928
    %v992 = vpop.f32.mrb[0].mxu0
    %v993 = vadd.f32 %v454, %v992
    %v994 = vpop.f32.mrb[0].mxu0
    %v995 = vadd.f32 %v454, %v994
    %v996 = vpop.f32.mrb[0].mxu0
    %v997 = vadd.f32 %v459, %v996
    %v998 = vpop.f32.mrb[0].mxu0
    %v999 = vadd.f32 %v459, %v998
    %1000 = vmatprep.mubr.bf16.mxu0 0
    %1001 = vmatmul.mubr.bf16.gmra.mrb[0].mxu0 %v931
    %v1002 = vpop.f32.mrb[0].mxu0
    %v1003 = vadd.f32 %v464, %v1002
    %v1004 = vpop.f32.mrb[0].mxu0
    %v1005 = vadd.f32 %v464, %v1004
    %v1006 = vpop.f32.mrb[0].mxu0
    %v1007 = vadd.f32 %v469, %v1006
    %v1008 = vpop.f32.mrb[0].mxu0
    %v1009 = vadd.f32 %v469, %v1008
    %1010 = vmatprep.mubr.bf16.mxu0 0
    %1011 = vmatmul.mubr.bf16.gmra.mrb[0].mxu0 %v934
    %v1012 = vpop.f32.mrb[0].mxu0
    %v1013 = vadd.f32 %v474, %v1012
    %v1014 = vpop.f32.mrb[0].mxu0
    %v1015 = vadd.f32 %v474, %v1014
    %v1016 = vpop.f32.mrb[0].mxu0
    %v1017 = vadd.f32 %v479, %v1016
    %v1018 = vpop.f32.mrb[0].mxu0
    %v1019 = vadd.f32 %v479, %v1018
    %1020 = vmatprep.mubr.bf16.mxu0 0
    %1021 = vmatmul.mubr.bf16.gmra.mrb[0].mxu0 %v937
    %v1022 = vpop.f32.mrb[0].mxu0
    %v1023 = vadd.f32 %v484, %v1022
    %v1024 = vpop.f32.mrb[0].mxu0
    %v1025 = vadd.f32 %v484, %v1024
    %v1026 = vpop.f32.mrb[0].mxu0
    %v1027 = vadd.f32 %v489, %v1026
    %v1028 = vpop.f32.mrb[0].mxu0
    %v1029 = vadd.f32 %v489, %v1028
    %1030 = vmatprep.mubr.bf16.mxu0 0
    %1031 = vmatmul.mubr.bf16.gmra.mrb[0].mxu0 %v940
    %v1032 = vpop.f32.mrb[0].mxu0
    %v1033 = vadd.f32 %v494, %v1032
    %v1034 = vpop.f32.mrb[0].mxu0
    %v1035 = vadd.f32 %v494, %v1034
    %v1036 = vpop.f32.mrb[0].mxu0
    %v1037 = vadd.f32 %v499, %v1036
    %v1038 = vpop.f32.mrb[0].mxu0
    %v1039 = vadd.f32 %v499, %v1038
    %1040 = vmatprep.mubr.bf16.mxu0 0
    %1041 = vmatmul.mubr.bf16.gmra.mrb[0].mxu0 %v943
    %v1042 = vpop.f32.mrb[0].mxu0
    %v1043 = vadd.f32 %v504, %v1042
    %v1044 = vpop.f32.mrb[0].mxu0
    %v1045 = vadd.f32 %v504, %v1044
    %v1046 = vpop.f32.mrb[0].mxu0
    %v1047 = vadd.f32 %v509, %v1046
    %v1048 = vpop.f32.mrb[0].mxu0
    %v1049 = vadd.f32 %v509, %v1048
    %1050 = vmatprep.mubr.bf16.mxu0 0
    %1051 = vmatmul.mubr.bf16.gmra.mrb[0].mxu0 %v946
    %v1052 = vpop.f32.mrb[0].mxu0
    %v1053 = vadd.f32 %v514, %v1052
    %v1054 = vpop.f32.mrb[0].mxu0
    %v1055 = vadd.f32 %v514, %v1054
    %v1056 = vpop.f32.mrb[0].mxu0
    %v1057 = vadd.f32 %v519, %v1056
    %v1058 = vpop.f32.mrb[0].mxu0
    %v1059 = vadd.f32 %v519, %v1058
    %1060 = vdwg.mxu0
    %v1061 = vpack.c.bf16 %v987, %v983
    %v1062 = vpack.c.bf16 %v989, %v985
    %v1063 = vpack.c.bf16 %v997, %v993
    %v1064 = vpack.c.bf16 %v999, %v995
    %v1065 = vpack.c.bf16 %v1007, %v1003
    %v1066 = vpack.c.bf16 %v1009, %v1005
    %v1067 = vpack.c.bf16 %v1017, %v1013
    %v1068 = vpack.c.bf16 %v1019, %v1015
    %v1069 = vpack.c.bf16 %v1027, %v1023
    %v1070 = vpack.c.bf16 %v1029, %v1025
    %v1071 = vpack.c.bf16 %v1037, %v1033
    %v1072 = vpack.c.bf16 %v1039, %v1035
    %v1073 = vpack.c.bf16 %v1047, %v1043
    %v1074 = vpack.c.bf16 %v1049, %v1045
    %v1075 = vpack.c.bf16 %v1057, %v1053
    %v1076 = vpack.c.bf16 %v1059, %v1055
    %v1077 = vmax.bf16 %v1061, 0
    %v1078 = vmax.bf16 %v1062, 0
    %v1079 = vmax.bf16 %v1063, 0
    %v1080 = vmax.bf16 %v1064, 0
    %v1081 = vmax.bf16 %v1065, 0
    %v1082 = vmax.bf16 %v1066, 0
    %v1083 = vmax.bf16 %v1067, 0
    %v1084 = vmax.bf16 %v1068, 0
    %v1085 = vmax.bf16 %v1069, 0
    %v1086 = vmax.bf16 %v1070, 0
    %v1087 = vmax.bf16 %v1071, 0
    %v1088 = vmax.bf16 %v1072, 0
    %v1089 = vmax.bf16 %v1073, 0
    %v1090 = vmax.bf16 %v1074, 0
    %v1091 = vmax.bf16 %v1075, 0
    %v1092 = vmax.bf16 %v1076, 0
    %v1093 = vld [vmem:[%s3] sm:$0xf]
    %v1094 = vld [vmem:[%s3 + $0x4] sm:$0xf]
    %v1095 = vld [vmem:[%s3 + $0x8] sm:$0xf]
    %v1096 = vld [vmem:[%s3 + $0xc] sm:$0xf]
    %v1101 = vunpack.c.l.b16 %v1093
    %v1102 = vunpack.c.l.b16 %v1094
    %v1103 = vunpack.c.l.b16 %v1095
    %v1104 = vunpack.c.l.b16 %v1096
    %v1105 = vpack.c.b16 %v1102, %v1101
    %v1106 = vpack.c.b16 %v1104, %v1103
    %1109 = vmatprep.subr.bf16.mxu0 %v1078
    %1110 = vmatpush1.bf16.msra.mxu0 %v1077
    %1111 = vmatprep.subr.bf16.mxu0 %v1080
    %1112 = vmatpush1.bf16.msra.mxu0 %v1079
    %1113 = vmatprep.subr.bf16.mxu0 %v1082
    %1114 = vmatpush1.bf16.msra.mxu0 %v1081
    %1115 = vmatprep.subr.bf16.mxu0 %v1084
    %1116 = vmatpush1.bf16.msra.mxu0 %v1083
    %1117 = vmatprep.subr.bf16.mxu0 %v1086
    %1118 = vmatpush1.bf16.msra.mxu0 %v1085
    %1119 = vmatprep.subr.bf16.mxu0 %v1088
    %1120 = vmatpush1.bf16.msra.mxu0 %v1087
    %1121 = vmatprep.subr.bf16.mxu0 %v1090
    %1122 = vmatpush1.bf16.msra.mxu0 %v1089
    %1123 = vmatprep.subr.bf16.mxu0 %v1092
    %1124 = vmatpush1.bf16.msra.mxu0 %v1091
    %1125 = vmatprep.subr.bf16.mxu0 0
    %1126 = vmatpush1.bf16.msra.mxu0 0
    %1127 = vmatprep.subr.bf16.mxu0 0
    %1128 = vmatpush1.bf16.msra.mxu0 0
    %1129 = vmatprep.subr.bf16.mxu0 0
    %1130 = vmatpush1.bf16.msra.mxu0 0
    %1131 = vmatprep.subr.bf16.mxu0 0
    %1132 = vmatpush1.bf16.msra.mxu0 0
    %1133 = vmatprep.subr.bf16.mxu0 0
    %1134 = vmatpush1.bf16.msra.mxu0 0
    %1135 = vmatprep.subr.bf16.mxu0 0
    %1136 = vmatpush1.bf16.msra.mxu0 0
    %1137 = vmatprep.subr.bf16.mxu0 0
    %1138 = vmatpush1.bf16.msra.mxu0 0
    %1139 = vmatprep.subr.bf16.mxu0 0
    %1140 = vmatpush1.bf16.msra.mxu0 0
    %1141 = vmatprep.mubr.bf16.mxu0 0
    %1142 = vmatmul.mubr.bf16.gmra.mrb[0].mxu0 %v1105
    %v1143 = vpop.f32.mrb[0].mxu0
    %v1144 = vadd.f32 %v738, %v1143
    %v1145 = vpop.f32.mrb[0].mxu0
    %v1146 = vadd.f32 %v738, %v1145
    %v1147 = vpop.f32.mrb[0].mxu0
    %v1148 = vadd.f32 %v743, %v1147
    %v1149 = vpop.f32.mrb[0].mxu0
    %v1150 = vadd.f32 %v743, %v1149
    %1151 = vmatprep.mubr.bf16.mxu0 0
    %1152 = vmatmul.mubr.bf16.gmra.mrb[0].mxu0 %v1106
    %v1153 = vpop.f32.mrb[0].mxu0
    %v1154 = vadd.f32 %v748, %v1153
    %v1155 = vpop.f32.mrb[0].mxu0
    %v1156 = vadd.f32 %v748, %v1155
    %v1157 = vpop.f32.mrb[0].mxu0
    %v1158 = vadd.f32 %v753, %v1157
    %v1159 = vpop.f32.mrb[0].mxu0
    %v1160 = vadd.f32 %v753, %v1159
    %1161 = vdwg.mxu0
    %v1162 = vmul.f32 %v1144, %v823
    %v1163 = vmul.f32 %v1146, %v823
    %v1164 = vmul.f32 %v1148, %v828
    %v1165 = vmul.f32 %v1150, %v828
    %v1166 = vmul.f32 %v1154, %v833
    %v1167 = vmul.f32 %v1156, %v833
    %v1168 = vmul.f32 %v1158, %v838
    %v1169 = vmul.f32 %v1160, %v838
    %v1170 = vadd.f32 %v413, %v1162
    %v1171 = vadd.f32 %v414, %v1163
    %v1172 = vadd.f32 %v415, %v1164
    %v1173 = vadd.f32 %v416, %v1165
    %v1174 = vadd.f32 %v417, %v1166
    %v1175 = vadd.f32 %v418, %v1167
    %v1176 = vadd.f32 %v419, %v1168
    %v1177 = vadd.f32 %v420, %v1169
    %s1178 = scalar_lea.vmem [#allocation5], 64
    %1179 = vst [vmem:[%s1178] sm:$0xff] %v1170
    %1180 = vst [vmem:[%s1178 + $0x8] sm:$0xff] %v1171
    %1181 = vst [vmem:[%s1178 + $0x10] sm:$0xff] %v1172
    %1182 = vst [vmem:[%s1178 + $0x18] sm:$0xff] %v1173
    %1183 = vst [vmem:[%s1178 + $0x20] sm:$0xff] %v1174
    %1184 = vst [vmem:[%s1178 + $0x28] sm:$0xff] %v1175
    %1185 = vst [vmem:[%s1178 + $0x30] sm:$0xff] %v1176
    %1186 = vst [vmem:[%s1178 + $0x38] sm:$0xff] %v1177
    // Predicated region
    $region26: #{tpu_custom_call.1} parent=1 // pred_check
      _
    $region27: #{tpu_custom_call.1} parent=1 // pred_check_branch
      %1188 = sbr.rel (0) target = $region29
    $region28: #{tpu_custom_call.1} parent=1 // pred_region
      %s1190 = ssub.s32 2048, 2048
      %1191 = vsyncadd [#allocation4], %s1190
      %s1192 = sshll.u32 [#allocation5], 4
      %s1193 = int_to_ptr.vmem [resolvable:$true] %s1192
      %1198 = dma.vmem_to_hbm [thread:$0]  %s1193, 2048, %s5, [#allocation4], 256, 256, 16
    $region29: #{tpu_custom_call.1} parent=1 // pred_fallthru
      _
    // Predicated region
    $region30: #{tpu_custom_call.1} parent=1 // pred_check
      _
    $region31: #{tpu_custom_call.1} parent=1 // pred_check_branch
      %1200 = sbr.rel (0) target = $region33
    $region32: #{tpu_custom_call.1} parent=1 // pred_region
      %1201 = dma.done [#allocation4], 2048
    $region33: #{tpu_custom_call.1} parent=1 // pred_fallthru
      _
    %1202 = vsyncpa [#allocation3], 1
    %1203 = vsyncpa [#allocation4], 1

</llo_original>
